<compile_context>
chip_gen: v6e
topology: v6e:2x2x1
jax: 0.10.0
libtpu: 0.0.40
codegen_flags: <defaults>
</compile_context>

<pallas_src>
from typing import List, Tuple

import numpy as np
import jax
import jax.numpy as jnp
from jax import lax
from jax.experimental import pallas as pl
from jax.experimental.pallas import tpu as pltpu


def tau_decompose(taus: List[int]) -> Tuple[List[int], List[int], List[int], List[int]]:
    mlos, mhis, l_begin, l_end = [], [], [], []
    for l, t in enumerate(taus):
        l_begin.append(0 if not mhis else mhis[-1])
        for _ in range(t):
            mlos.append(0 if not mhis else mhis[-1])
            mhis.append(mlos[-1] + 2 * l + 1)
        l_end.append(0 if not mhis else mhis[-1])
    return (mlos, mhis, l_begin, l_end)


# ----------------------------- helpers ------------------------------------ #

def _cdiv(a: int, b: int) -> int:
    return -(-a // b)


def _round_up(x: int, m: int) -> int:
    return _cdiv(x, m) * m


def _round_down(x: int, m: int) -> int:
    return (x // m) * m


def _sum_matrix(f_chunk: int, stride: int, t_fold: int) -> np.ndarray:
    """0/1 summing matrix [f_chunk*stride*2, f_chunk*2], block-diag over t_fold."""
    m_in, m_out = 2 * f_chunk * stride, 2 * f_chunk
    rows = np.arange(m_in)
    f, ri = rows // 2, rows % 2
    cols = (f // stride) * 2 + ri
    p0 = np.zeros((m_in, m_out), dtype=np.float32)
    p0[rows, cols] = 1.0
    if t_fold > 1:
        p0 = np.kron(np.eye(t_fold, dtype=np.float32), p0)  # block diagonal
    return p0


def _choose_lane_chunking(T: int, Fout: int, stride: int,
                          p_budget: int, lane_target: int) -> Tuple[int, int, int]:
    """Return (t_fold, f_chunk, n_chunks).

    Either t_fold >= 1 with f_chunk == Fout (narrow outputs: fold time into
    lanes), or t_fold == 1 with the output-frequency axis chunked (wide
    outputs: bound the per-chunk matmul intensity and the sum-matrix size).
    """
    m_in, m_out = 2 * Fout * stride, 2 * Fout
    if m_out <= lane_target:
        best, best_aligned = 1, 0
        for d in range(1, T + 1):
            if T % d:
                continue
            if d * m_out > lane_target:
                continue
            if (d * m_in) * (d * m_out) * 4 > p_budget:
                continue
            best = d
            if (d * m_out) % 128 == 0:
                best_aligned = d
        # TODO(synk): if even t_fold == 1 exceeds p_budget (huge F with tiny
        # Fout, i.e. extreme stride) the sum matrix is simply kept larger;
        # vmem_limit below is sized to cover it.
        return (best_aligned or best), Fout, 1
    # Wide output: chunk output frequencies; chunk lane widths must be
    # multiples of 128 (f_chunk multiple of 64) since blocks are partial.
    f_chunk = min(Fout, max(64, lane_target // 2))
    f_chunk = max(64, _round_down(f_chunk, 64))
    while f_chunk > 64 and (f_chunk * stride * 2) * (f_chunk * 2) * 4 > p_budget:
        f_chunk -= 64
    return 1, f_chunk, _cdiv(Fout, f_chunk)


def _choose_row_tile(R: int, in_row_bytes: int, out_row_bytes: int, row_align: int,
                     vmem_budget: int, p_bytes: int, n_lane_chunks: int) -> int:
    if R <= row_align:
        return R                                    # single full-extent block
    per_row = 2 * (in_row_bytes + out_row_bytes)    # double-buffered in + out
    rows_budget = max(row_align, (vmem_budget - p_bytes) // max(per_row, 1))
    rows_target = max(row_align, (2 << 20) // max(in_row_bytes, 1))  # ~2 MiB input blocks
    tn = max(row_align, _round_down(min(rows_target, rows_budget), row_align))
    tn = min(tn, _round_down(R, row_align))         # never a block taller than R
    # keep >= 2 total grid steps (v7x has 2 TensorCores sharing the grid)
    if _cdiv(R, tn) * n_lane_chunks < 2:
        tn = min(_round_down(R, row_align),
                 max(row_align, _round_up(_cdiv(R, 2), row_align)))
    return tn


# ------------------------------ kernel ------------------------------------ #

def _make_pool_kernel(scale: float, cast_to_f32: bool, precision):
    def kernel(x_ref, p_ref, o_ref):
        # out[r, :] = (x[r, :] @ P) * (1/stride), with P a constant 0/1
        # block-diagonal summing matrix.  The MXU is idle in this mem-bound
        # op, so the matmul is effectively free and avoids any XLU
        # lane-shuffles; accumulation is f32 -> exact mean.
        x = x_ref[...]
        if cast_to_f32:
            x = x.astype(jnp.float32)
        acc = jnp.dot(x, p_ref[...], precision=precision,
                      preferred_element_type=jnp.float32)
        o_ref[...] = (acc * scale).astype(o_ref.dtype)
    return kernel


# ------------------------------ module ------------------------------------ #

class GroupAvgPool1dBCTF2:
    """Average pooling over the FREQ axis in blocks of `stride`."""

    def __init__(self, stride: int, taus: List[int]):
        self.stride = stride
        self.taus = taus
        self.mlos, self.mhis, _, _ = tau_decompose(taus)

    def __call__(self, x: jnp.ndarray) -> jnp.ndarray:
        B, CH, T, F, RI = x.shape
        assert RI == 2 and CH == self.mhis[-1]
        stride = self.stride
        assert F % stride == 0
        Fout = F // stride
        itemsize = x.dtype.itemsize

        # --- dtype / precision policy -----------------------------------
        if x.dtype == jnp.float32:
            p_dtype, precision, cast_to_f32 = jnp.float32, lax.Precision.HIGHEST, False
            lane_target = 256      # keep HIGHEST-precision matmul memory-bound
        elif x.dtype == jnp.bfloat16:
            p_dtype, precision, cast_to_f32 = jnp.bfloat16, lax.Precision.DEFAULT, False
            lane_target = 512      # native bf16 MXU, f32 accumulation
        else:
            p_dtype, precision, cast_to_f32 = jnp.float32, lax.Precision.HIGHEST, True
            lane_target = 256

        # --- generation-aware VMEM budget (v7x: 64 MiB phys; v5e/v6e: 128) ---
        try:
            vmem_cap = int(pltpu.get_tpu_info().vmem_capacity_bytes)
        except Exception:
            vmem_cap = 64 << 20                     # conservative (v7x per-TC)
        vmem_budget = max(8 << 20, min(vmem_cap // 4, 32 << 20))
        p_budget = min(8 << 20, vmem_budget // 2)

        # --- lane layout: fold time into lanes, or chunk the freq axis ---
        t_fold, f_chunk, n_chunks = _choose_lane_chunking(T, Fout, stride,
                                                          p_budget, lane_target)
        t_outer = T // t_fold                       # time steps left in rows
        R = B * CH * t_outer                        # rows of the 2-D view
        c_in = t_fold * f_chunk * stride * 2        # input lanes per chunk
        c_out = t_fold * f_chunk * 2                # output lanes per chunk
        total_in = t_fold * F * 2                   # full lane width (input)
        total_out = t_fold * Fout * 2               # full lane width (output)

        pmat = jnp.asarray(_sum_matrix(f_chunk, stride, t_fold), dtype=p_dtype)
        p_bytes = c_in * c_out * jnp.dtype(p_dtype).itemsize

        row_align = max(8, 32 // itemsize)          # f32: 8, bf16: 16, int8: 32
        tn = _choose_row_tile(R, c_in * itemsize, c_out * itemsize, row_align,
                              vmem_budget, p_bytes, n_chunks)
        grid = (_cdiv(R, tn), n_chunks)

        needed = 2 * tn * (c_in + c_out) * itemsize + p_bytes
        vmem_limit = int(min(max(16 << 20, needed + (4 << 20)), 48 << 20))

        # Free reshape (contiguous dim merges) — no HBM transpose / extra pass.
        x2d = x.reshape(R, total_in)

        out2d = pl.pallas_call(
            _make_pool_kernel(1.0 / float(stride), cast_to_f32, precision),
            out_shape=jax.ShapeDtypeStruct((R, total_out), x.dtype),
            grid_spec=pltpu.PrefetchScalarGridSpec(
                num_scalar_prefetch=0,
                grid=grid,
                in_specs=[
                    pl.BlockSpec((tn, c_in), lambda i, j: (i, j)),
                    pl.BlockSpec((c_in, c_out), lambda i, j: (0, 0)),  # resident
                ],
                out_specs=pl.BlockSpec((tn, c_out), lambda i, j: (i, j)),
            ),
            compiler_params=pltpu.CompilerParams(
                dimension_semantics=("parallel", "parallel"),
                vmem_limit_bytes=vmem_limit,
            ),
            cost_estimate=pl.CostEstimate(
                flops=2 * R * n_chunks * c_in * c_out,
                transcendentals=0,
                bytes_accessed=R * (total_in + total_out) * itemsize + p_bytes,
            ),
        )(x2d, pmat)

        # Free reshape back: rows = (B, CH, t_outer), lanes = (t_fold, Fout, 2).
        return out2d.reshape(B, CH, T, Fout, 2)


# ------------------------------- test -------------------------------------- #

def _reference_f32(x: jnp.ndarray, stride: int) -> jnp.ndarray:
    B, CH, T, F, RI = x.shape
    xf = x.astype(jnp.float32)
    return jnp.mean(xf.reshape(B, CH, T, F // stride, stride, RI), axis=4)


if __name__ == "__main__":
    key = jax.random.PRNGKey(0)

    stride = 2
    taus = [1, 2]
    CH = tau_decompose(taus)[1][-1]          # 7

    # Case 1: small f32 shapes (stride=2), narrow output lanes (time fold).
    B, T, F = 2, 4, 16
    key, k1 = jax.random.split(key)
    x = jax.random.normal(k1, (B, CH, T, F, 2), dtype=jnp.float32)
    out = jax.block_until_ready(GroupAvgPool1dBCTF2(stride, taus)(x))
    ref = _reference_f32(x, stride)
    assert out.shape == (B, CH, T, F // stride, 2), out.shape
    assert jnp.allclose(out, ref, atol=1e-5, rtol=1e-5), \
        float(jnp.max(jnp.abs(out - ref)))

    # Case 2: lane-dense (multiple-of-128) time-fold path, stride=4.
    stride2 = 4
    B2, T2, F2 = 2, 8, 32
    key, k2 = jax.random.split(key)
    x2 = jax.random.normal(k2, (B2, CH, T2, F2, 2), dtype=jnp.float32)
    out2 = jax.block_until_ready(GroupAvgPool1dBCTF2(stride2, taus)(x2))
    ref2 = _reference_f32(x2, stride2)
    assert out2.shape == (B2, CH, T2, F2 // stride2, 2), out2.shape
    assert jnp.allclose(out2, ref2, atol=1e-5, rtol=1e-5), \
        float(jnp.max(jnp.abs(out2 - ref2)))

    # Case 3: wide output -> frequency-chunked path (2 lane chunks).
    B3, T3, F3 = 1, 2, 512
    key, k3 = jax.random.split(key)
    x3 = jax.random.normal(k3, (B3, CH, T3, F3, 2), dtype=jnp.float32)
    out3 = jax.block_until_ready(GroupAvgPool1dBCTF2(stride, taus)(x3))
    ref3 = _reference_f32(x3, stride)
    assert out3.shape == (B3, CH, T3, F3 // stride, 2), out3.shape
    assert jnp.allclose(out3, ref3, atol=1e-5, rtol=1e-5), \
        float(jnp.max(jnp.abs(out3 - ref3)))

    # Case 4: bf16 input — native-dtype MXU path (no tile-wide f32 cast).
    key, k4 = jax.random.split(key)
    x4 = jax.random.normal(k4, (B2, CH, T2, F2, 2), dtype=jnp.float32).astype(jnp.bfloat16)
    out4 = jax.block_until_ready(GroupAvgPool1dBCTF2(stride2, taus)(x4))
    ref4 = _reference_f32(x4, stride2)
    assert out4.dtype == jnp.bfloat16 and out4.shape == (B2, CH, T2, F2 // stride2, 2)
    assert jnp.allclose(out4.astype(jnp.float32), ref4, atol=1e-2, rtol=1e-2), \
        float(jnp.max(jnp.abs(out4.astype(jnp.float32) - ref4)))

    print("KERNEL_OK")
</pallas_src>

<mosaic_0001>
module attributes {stable_mosaic.version = 11 : i64} {
  func.func @kernel(%arg0: i32, %arg1: i32, %arg2: memref<8x128xf32, #tpu.memory_space<vmem>>, %arg3: memref<128x64xf32, #tpu.memory_space<vmem>>, %arg4: memref<8x64xf32, #tpu.memory_space<vmem>>) attributes {dimension_semantics = [#tpu.dimension_semantics<parallel>, #tpu.dimension_semantics<parallel>], iteration_bounds = array<i64: 2, 1>, scalar_prefetch = 0 : i64, scratch_operands = 0 : i64, tpu.core_type = #tpu.core_type<tc>, window_params = [{transform_indices = @transform_0, window_bounds = array<i64: 8, 128>}, {pipeline_mode = #tpu.pipeline_mode<synchronous>, transform_indices = @transform_1, window_bounds = array<i64: 128, 64>}, {transform_indices = @transform_2, window_bounds = array<i64: 8, 64>}]} {
    %c0 = arith.constant 0 : index
    %c0_0 = arith.constant 0 : index
    %0 = vector.load %arg2[%c0, %c0_0] : memref<8x128xf32, #tpu.memory_space<vmem>>, vector<8x128xf32>
    %c0_1 = arith.constant 0 : index
    %c0_2 = arith.constant 0 : index
    %1 = vector.load %arg3[%c0_1, %c0_2] : memref<128x64xf32, #tpu.memory_space<vmem>>, vector<128x64xf32>
    %cst = arith.constant dense<0.000000e+00> : vector<8x64xf32>
    %2 = tpu.matmul %0, %1, %cst {dimension_numbers = #tpu.dot_dimension_numbers<[1], [0], [0], [1], [0, 0, 1, 1], [], []>, precision = #tpu.contract_precision<fp32>} : vector<8x128xf32>, vector<128x64xf32>, vector<8x64xf32> -> vector<8x64xf32>
    %cst_3 = arith.constant 5.000000e-01 : f32
    %3 = vector.broadcast %cst_3 : f32 to vector<8x64xf32>
    %4 = arith.mulf %2, %3 : vector<8x64xf32>
    %c0_4 = arith.constant 0 : index
    %c0_5 = arith.constant 0 : index
    %5 = vector.load %arg4[%c0_4, %c0_5] : memref<8x64xf32, #tpu.memory_space<vmem>>, vector<8x64xf32>
    tpu.vector_store %arg4[%c0_4, %c0_5], %4 {strides = array<i32>} : memref<8x64xf32, #tpu.memory_space<vmem>>, vector<8x64xf32>,
    return
  }
  func.func @transform_0(%arg0: i32, %arg1: i32) -> (i32, i32) {
    %c0_i32 = arith.constant 0 : i32
    return %arg0, %arg1 : i32, i32
  }
  func.func @transform_1(%arg0: i32, %arg1: i32) -> (i32, i32) {
    %c0_i32 = arith.constant 0 : i32
    %c0_i32_0 = arith.constant 0 : i32
    %c0_i32_1 = arith.constant 0 : i32
    return %c0_i32, %c0_i32_0 : i32, i32
  }
  func.func @transform_2(%arg0: i32, %arg1: i32) -> (i32, i32) {
    %c0_i32 = arith.constant 0 : i32
    return %arg0, %arg1 : i32, i32
  }
}

</mosaic_0001>

<llo_original>
// kernel: tpu_custom_call.1
$region0: #{tpu_custom_call.1}
  #allocation0 [shape = 'u32[]', space=smem, size = 0x4, offset = 0x4, fixed_abs, tag = 'smem constant byte address 0x4 - core index']
  #allocation1 [shape = 'u32[144,128]{1,0:T(1,128)}', space=vmem, size = 0x12000, scoped, tag = 'internal scratch']
  %s0 = inlined_call_operand.vmem [shape: f32[14,128], index: 0, kind: input, shape index: {}]
  %s1 = inlined_call_operand.vmem [shape: f32[128,64], index: 1, kind: input, shape index: {}]
  %s2 = inlined_call_operand.hbm [shape: f32[14,64], index: 2, kind: output, shape index: {}]
  %s3 = sld [smem:[#allocation0]]
  $region41: #{tpu_custom_call.1} parent=0
    _
  %s5 = ssub.s32 1, %s3
  %s6 = scalar_select 0, %s5, %s3
  $region1: #{tpu_custom_call.1} parent=0
    #allocation2 [shape = 'u8[8192]{0}', space=vmem, size = 0x2000, scoped, tag = 'output window, operand 0']
    #allocation3 [shape = 's32[2]{0}', space=sflag, size = 0x8, scoped, tag = 'scoped memory for tpu_custom_call.1']
    %7 = vsyncpa [#allocation3], 0
    %s8 = scalar_lea.sflag [#allocation3], 1
    %9 = vsyncpa %s8, 0
    loop: start=0, step=1, limit=4
    $region2: #{tpu_custom_call.1} parent=1 // loop_pre_header
      _
    $region3: #{tpu_custom_call.1} parent=1 // loop_header
      %s11 = sphi 0, %s15
      %p12 = scmp.ge.s32.totalorder %s11, 4
      %s18 = sphi 0, %s30
      %s19 = sphi 0, %s26
      %s20 = sphi 0, %s18
      %s21 = sphi 0, %s19
      %s22 = sphi 0, %s20
      %s23 = sphi 0, %s21
      %s35 = sphi 0, %s37
      %s38 = sphi 0, %s35
      %s39 = sphi 0, %s38
      %s55 = sphi 0, %s39
      %s59 = sphi 0, %s59
      %s61 = sphi 0, %s59
      %s62 = sphi 0, %s61
      %s76 = sphi 0, %s62
      %s84 = sphi 0, %s86
      %s87 = sphi 0, %s84
      %s88 = sphi 0, %s87
      %s104 = sphi 0, %s88
    $region4: #{tpu_custom_call.1} parent=1 // loop_header_branch
      %14 = sbr.rel (%p12) target = $region8
    $region5: #{tpu_custom_call.1} parent=1 // loop_body
      %s16 = ssub.s32 %s11, 1
      %s17 = ssub.s32 %s11, 2
      %s24 = sadd.s32 1, %s19
      %p25 = scmp.ge.s32.totalorder %s24, 1
      %s26 = scalar_select %p25, 0, %s24
      %s27 = sadd.s32 1, %s18
      %s28 = scalar_select %p25, %s27, %s18
      %p29 = scmp.ge.s32.totalorder %s28, 2
      %s30 = scalar_select %p29, 0, %s28
      %s31 = ssub.s32 %s18, %s30
      %s32 = ssub.s32 %s19, %s26
      %s33 = sor.u32 %s31, %s32
      %p34 = scmp.eq.s32.totalorder %s33, 0
      %s36 = sadd.s32 %s35, 1
      %s37 = scalar_select %p34, %s35, %s36
      %p40 = pneg %p34
      %p41 = scmp.eq.s32.totalorder %s11, 1
      %p42 = por %p40, %p41
      %p43 = scmp.ne.s32.totalorder %s35, %s38
      %p44 = scmp.eq.s32.totalorder %s11, 0
      %p45 = por %p43, %p44
      %p46 = scmp.ne.s32.totalorder %s35, %s38
      %p47 = scmp.eq.s32.totalorder %s16, 1
      %p48 = por %p46, %p47
      %p49 = scmp.ne.s32.totalorder %s38, %s39
      %p50 = scmp.eq.s32.totalorder %s16, 0
      %p51 = por %p49, %p50
      %p52 = scmp.ne.s32.totalorder %s38, %s39
      %p53 = scmp.eq.s32.totalorder %s17, 1
      %p54 = por %p52, %p53
      %p56 = scmp.ne.s32.totalorder %s39, %s55
      %p57 = scmp.eq.s32.totalorder %s17, 0
      %p58 = por %p56, %p57
      %s60 = sadd.s32 %s59, 1
      %p63 = scmp.eq.s32.totalorder %s11, 1
      %p64 = scmp.ne.s32.totalorder %s59, %s61
      %p65 = scmp.eq.s32.totalorder %s11, 0
      %p66 = por %p64, %p65
      %p67 = scmp.ne.s32.totalorder %s59, %s61
      %p68 = scmp.eq.s32.totalorder %s16, 1
      %p69 = por %p67, %p68
      %p70 = scmp.ne.s32.totalorder %s61, %s62
      %p71 = scmp.eq.s32.totalorder %s16, 0
      %p72 = por %p70, %p71
      %p73 = scmp.ne.s32.totalorder %s61, %s62
      %p74 = scmp.eq.s32.totalorder %s17, 1
      %p75 = por %p73, %p74
      %p77 = scmp.ne.s32.totalorder %s62, %s76
      %p78 = scmp.eq.s32.totalorder %s17, 0
      %p79 = por %p77, %p78
      %s80 = ssub.s32 %s18, %s30
      %s81 = ssub.s32 %s19, %s26
      %s82 = sor.u32 %s80, %s81
      %p83 = scmp.eq.s32.totalorder %s82, 0
      %s85 = sadd.s32 %s84, 1
      %s86 = scalar_select %p83, %s84, %s85
      %p89 = pneg %p83
      %p90 = scmp.eq.s32.totalorder %s11, 1
      %p91 = por %p89, %p90
      %p92 = scmp.ne.s32.totalorder %s84, %s87
      %p93 = scmp.eq.s32.totalorder %s11, 0
      %p94 = por %p92, %p93
      %p95 = scmp.ne.s32.totalorder %s84, %s87
      %p96 = scmp.eq.s32.totalorder %s16, 1
      %p97 = por %p95, %p96
      %p98 = scmp.ne.s32.totalorder %s87, %s88
      %p99 = scmp.eq.s32.totalorder %s16, 0
      %p100 = por %p98, %p99
      %p101 = scmp.ne.s32.totalorder %s87, %s88
      %p102 = scmp.eq.s32.totalorder %s17, 1
      %p103 = por %p101, %p102
      %p105 = scmp.ne.s32.totalorder %s88, %s104
      %p106 = scmp.eq.s32.totalorder %s17, 0
      %p107 = por %p105, %p106
      %p108 = scmp.le.s32.totalorder 1, %s11
      %p109 = scmp.lt.s32.totalorder %s11, 3
      %p110 = pnand %p108, %p109
      %p111 = pneg %p110
      // Predicated region
      $region9: #{tpu_custom_call.1} parent=5 // pred_check
        _
      $region10: #{tpu_custom_call.1} parent=5 // pred_check_branch
        %113 = sbr.rel (%p110) target = $region12
      $region11: #{tpu_custom_call.1} parent=5 // pred_region
        %s114 = ssub.s32 %s11, 1
        // Predicated region
        $region13: #{tpu_custom_call.1} parent=11 // pred_check
          %p115 = pneg %p72
        $region14: #{tpu_custom_call.1} parent=11 // pred_check_branch
          %117 = sbr.rel (%p115) target = $region16
        $region15: #{tpu_custom_call.1} parent=11 // pred_region
          _
        $region16: #{tpu_custom_call.1} parent=11 // pred_fallthru
          _
      $region12: #{tpu_custom_call.1} parent=5 // pred_fallthru
        _
      %p118 = scmp.lt.s32.totalorder %s11, 2
      // Predicated region
      $region17: #{tpu_custom_call.1} parent=5 // pred_check
        %p119 = pneg %p118
      $region18: #{tpu_custom_call.1} parent=5 // pred_check_branch
        %121 = sbr.rel (%p119) target = $region20
      $region19: #{tpu_custom_call.1} parent=5 // pred_region
        // Predicated region
        $region21: #{tpu_custom_call.1} parent=19 // pred_check
          %p122 = pneg %p45
        $region22: #{tpu_custom_call.1} parent=19 // pred_check_branch
          %124 = sbr.rel (%p122) target = $region24
        $region23: #{tpu_custom_call.1} parent=19 // pred_region
          %p125 = scmp.lt.s32.totalorder %s18, 1
          %s126 = scalar_select %p125, %s18, 1
          %p127 = scmp.lt.s32.totalorder %s19, 0
          %s128 = scalar_select %p127, %s19, 0
          %s129 = sadd.s32 %s128, %s126
          %s130 = smul.addr %s129, 8
          %s131 = scalar_lea.vmem %s0, %s130
        $region24: #{tpu_custom_call.1} parent=19 // pred_fallthru
          _
      $region20: #{tpu_custom_call.1} parent=5 // pred_fallthru
        _
      %p132 = scmp.le.s32.totalorder 1, %s11
      %p133 = scmp.lt.s32.totalorder %s11, 3
      %p134 = pnand %p132, %p133
      %p135 = pneg %p134
      // Predicated region
      $region25: #{tpu_custom_call.1} parent=5 // pred_check
        _
      $region26: #{tpu_custom_call.1} parent=5 // pred_check_branch
        %137 = sbr.rel (%p134) target = $region28
      $region27: #{tpu_custom_call.1} parent=5 // pred_region
        %s138 = ssub.s32 %s11, 1
        %p139 = scmp.lt.s32.totalorder %s20, 1
        %s140 = scalar_select %p139, %s20, 1
        %p141 = scmp.lt.s32.totalorder %s21, 0
        %s142 = scalar_select %p141, %s21, 0
        %s143 = sadd.s32 %s142, %s140
        %s144 = smul.addr %s143, 8
        %s145 = scalar_lea.vmem %s0, %s144
        %p146 = pneg %p51
        %p147 = pneg %p48
        %p148 = pneg %p72
        %p149 = pneg %p69
        %p150 = pneg %p100
        %p151 = pneg %p97
        %s152 = sand.u32 %s87, 1
        %s153 = scalar_lea.sflag [#allocation3], %s152
        %s154 = sand.u32 %s87, 1
        %s155 = smul.addr %s154, 8
        %s156 = scalar_lea.vmem [#allocation2], %s155
        %p157 = scmp.lt.s32.totalorder %s20, 1
        %s158 = scalar_select %p157, %s20, 1
        %p159 = scmp.lt.s32.totalorder %s21, 0
        %s160 = scalar_select %p159, %s21, 0
        %s161 = sadd.s32 %s160, %s158
        %s162 = smul.addr %s161, 8
        %s163 = scalar_lea.vmem %s0, %s162
        %v164 = vld [vmem:[%s163] sm:$0xff]
        %v165 = vld [vmem:[%s1] sm:$0xff]
        %v166 = vld [vmem:[%s1 + $0x8] sm:$0xff]
        %v167 = vld [vmem:[%s1 + $0x10] sm:$0xff]
        %v168 = vld [vmem:[%s1 + $0x18] sm:$0xff]
        %v169 = vld [vmem:[%s1 + $0x20] sm:$0xff]
        %v170 = vld [vmem:[%s1 + $0x28] sm:$0xff]
        %v171 = vld [vmem:[%s1 + $0x30] sm:$0xff]
        %v172 = vld [vmem:[%s1 + $0x38] sm:$0xff]
        %v173 = vld [vmem:[%s1 + $0x40] sm:$0xff]
        %v174 = vld [vmem:[%s1 + $0x48] sm:$0xff]
        %v175 = vld [vmem:[%s1 + $0x50] sm:$0xff]
        %v176 = vld [vmem:[%s1 + $0x58] sm:$0xff]
        %v177 = vld [vmem:[%s1 + $0x60] sm:$0xff]
        %v178 = vld [vmem:[%s1 + $0x68] sm:$0xff]
        %v179 = vld [vmem:[%s1 + $0x70] sm:$0xff]
        %v180 = vld [vmem:[%s1 + $0x78] sm:$0xff]
        %181 = vmatprep.subr.mxu0 0.0
        %v182 = vand.u32 %v180, 4294901760
        %183 = vmatpush1.msra.mxu0 %v182
        %184 = vmatprep.subr.mxu0 0.0
        %v185 = vand.u32 %v179, 4294901760
        %186 = vmatpush1.msra.mxu0 %v185
        %187 = vmatprep.subr.mxu0 0.0
        %v188 = vand.u32 %v178, 4294901760
        %189 = vmatpush1.msra.mxu0 %v188
        %190 = vmatprep.subr.mxu0 0.0
        %v191 = vand.u32 %v177, 4294901760
        %192 = vmatpush1.msra.mxu0 %v191
        %193 = vmatprep.subr.mxu0 0.0
        %v194 = vand.u32 %v176, 4294901760
        %195 = vmatpush1.msra.mxu0 %v194
        %196 = vmatprep.subr.mxu0 0.0
        %v197 = vand.u32 %v175, 4294901760
        %198 = vmatpush1.msra.mxu0 %v197
        %199 = vmatprep.subr.mxu0 0.0
        %v200 = vand.u32 %v174, 4294901760
        %201 = vmatpush1.msra.mxu0 %v200
        %202 = vmatprep.subr.mxu0 0.0
        %v203 = vand.u32 %v173, 4294901760
        %204 = vmatpush1.msra.mxu0 %v203
        %205 = vmatprep.subr.mxu0 0.0
        %v206 = vand.u32 %v172, 4294901760
        %207 = vmatpush1.msra.mxu0 %v206
        %208 = vmatprep.subr.mxu0 0.0
        %v209 = vand.u32 %v171, 4294901760
        %210 = vmatpush1.msra.mxu0 %v209
        %211 = vmatprep.subr.mxu0 0.0
        %v212 = vand.u32 %v170, 4294901760
        %213 = vmatpush1.msra.mxu0 %v212
        %214 = vmatprep.subr.mxu0 0.0
        %v215 = vand.u32 %v169, 4294901760
        %216 = vmatpush1.msra.mxu0 %v215
        %217 = vmatprep.subr.mxu0 0.0
        %v218 = vand.u32 %v168, 4294901760
        %219 = vmatpush1.msra.mxu0 %v218
        %220 = vmatprep.subr.mxu0 0.0
        %v221 = vand.u32 %v167, 4294901760
        %222 = vmatpush1.msra.mxu0 %v221
        %223 = vmatprep.subr.mxu0 0.0
        %v224 = vand.u32 %v166, 4294901760
        %225 = vmatpush1.msra.mxu0 %v224
        %226 = vmatprep.subr.mxu0 0.0
        %v227 = vand.u32 %v165, 4294901760
        %228 = vmatpush1.msra.mxu0 %v227
        %229 = vmatprep.subr.mxu0 0.0
        %230 = vmatpush2.msra.mxu0 0.0
        %231 = vmatprep.subr.mxu0 0.0
        %232 = vmatpush2.msra.mxu0 0.0
        %233 = vmatprep.subr.mxu0 0.0
        %234 = vmatpush2.msra.mxu0 0.0
        %235 = vmatprep.subr.mxu0 0.0
        %236 = vmatpush2.msra.mxu0 0.0
        %237 = vmatprep.subr.mxu0 0.0
        %238 = vmatpush2.msra.mxu0 0.0
        %239 = vmatprep.subr.mxu0 0.0
        %240 = vmatpush2.msra.mxu0 0.0
        %241 = vmatprep.subr.mxu0 0.0
        %242 = vmatpush2.msra.mxu0 0.0
        %243 = vmatprep.subr.mxu0 0.0
        %244 = vmatpush2.msra.mxu0 0.0
        %245 = vmatprep.subr.mxu0 0.0
        %246 = vmatpush2.msra.mxu0 0.0
        %247 = vmatprep.subr.mxu0 0.0
        %248 = vmatpush2.msra.mxu0 0.0
        %249 = vmatprep.subr.mxu0 0.0
        %250 = vmatpush2.msra.mxu0 0.0
        %251 = vmatprep.subr.mxu0 0.0
        %252 = vmatpush2.msra.mxu0 0.0
        %253 = vmatprep.subr.mxu0 0.0
        %254 = vmatpush2.msra.mxu0 0.0
        %255 = vmatprep.subr.mxu0 0.0
        %256 = vmatpush2.msra.mxu0 0.0
        %257 = vmatprep.subr.mxu0 0.0
        %258 = vmatpush2.msra.mxu0 0.0
        %259 = vmatprep.subr.mxu0 0.0
        %260 = vmatpush2.msra.mxu0 0.0
        %261 = vmatprep.mubr.f32.mxu0 0.0
        %v262 = vand.u32 %v164, 4294901760
        %v263 = vsub.f32 %v164, %v262
        %v264 = vand.u32 %v263, 4294901760
        %v265 = vsub.f32 %v263, %v264
        %v266 = vand.u32 %v265, 4294901760
        %267 = vmatmul.mubr.f32.gmra.mxu0 %v266
        %v268 = vpop.f32.mrf.mxu0
        %v269 = vadd.f32 0.0, %v268
        %v270 = vpop.f32.mrf.mxu0
        %271 = vdwg.mxu0
        %272 = vmatprep.subr.mxu0 0.0
        %v273 = vand.u32 %v180, 4294901760
        %v274 = vsub.f32 %v180, %v273
        %v275 = vand.u32 %v274, 4294901760
        %v276 = vsub.f32 %v274, %v275
        %v277 = vand.u32 %v276, 4294901760
        %278 = vmatpush1.msra.mxu0 %v277
        %279 = vmatprep.subr.mxu0 0.0
        %v280 = vand.u32 %v179, 4294901760
        %v281 = vsub.f32 %v179, %v280
        %v282 = vand.u32 %v281, 4294901760
        %v283 = vsub.f32 %v281, %v282
        %v284 = vand.u32 %v283, 4294901760
        %285 = vmatpush1.msra.mxu0 %v284
        %286 = vmatprep.subr.mxu0 0.0
        %v287 = vand.u32 %v178, 4294901760
        %v288 = vsub.f32 %v178, %v287
        %v289 = vand.u32 %v288, 4294901760
        %v290 = vsub.f32 %v288, %v289
        %v291 = vand.u32 %v290, 4294901760
        %292 = vmatpush1.msra.mxu0 %v291
        %293 = vmatprep.subr.mxu0 0.0
        %v294 = vand.u32 %v177, 4294901760
        %v295 = vsub.f32 %v177, %v294
        %v296 = vand.u32 %v295, 4294901760
        %v297 = vsub.f32 %v295, %v296
        %v298 = vand.u32 %v297, 4294901760
        %299 = vmatpush1.msra.mxu0 %v298
        %300 = vmatprep.subr.mxu0 0.0
        %v301 = vand.u32 %v176, 4294901760
        %v302 = vsub.f32 %v176, %v301
        %v303 = vand.u32 %v302, 4294901760
        %v304 = vsub.f32 %v302, %v303
        %v305 = vand.u32 %v304, 4294901760
        %306 = vmatpush1.msra.mxu0 %v305
        %307 = vmatprep.subr.mxu0 0.0
        %v308 = vand.u32 %v175, 4294901760
        %v309 = vsub.f32 %v175, %v308
        %v310 = vand.u32 %v309, 4294901760
        %v311 = vsub.f32 %v309, %v310
        %v312 = vand.u32 %v311, 4294901760
        %313 = vmatpush1.msra.mxu0 %v312
        %314 = vmatprep.subr.mxu0 0.0
        %v315 = vand.u32 %v174, 4294901760
        %v316 = vsub.f32 %v174, %v315
        %v317 = vand.u32 %v316, 4294901760
        %v318 = vsub.f32 %v316, %v317
        %v319 = vand.u32 %v318, 4294901760
        %320 = vmatpush1.msra.mxu0 %v319
        %321 = vmatprep.subr.mxu0 0.0
        %v322 = vand.u32 %v173, 4294901760
        %v323 = vsub.f32 %v173, %v322
        %v324 = vand.u32 %v323, 4294901760
        %v325 = vsub.f32 %v323, %v324
        %v326 = vand.u32 %v325, 4294901760
        %327 = vmatpush1.msra.mxu0 %v326
        %328 = vmatprep.subr.mxu0 0.0
        %v329 = vand.u32 %v172, 4294901760
        %v330 = vsub.f32 %v172, %v329
        %v331 = vand.u32 %v330, 4294901760
        %v332 = vsub.f32 %v330, %v331
        %v333 = vand.u32 %v332, 4294901760
        %334 = vmatpush1.msra.mxu0 %v333
        %335 = vmatprep.subr.mxu0 0.0
        %v336 = vand.u32 %v171, 4294901760
        %v337 = vsub.f32 %v171, %v336
        %v338 = vand.u32 %v337, 4294901760
        %v339 = vsub.f32 %v337, %v338
        %v340 = vand.u32 %v339, 4294901760
        %341 = vmatpush1.msra.mxu0 %v340
        %342 = vmatprep.subr.mxu0 0.0
        %v343 = vand.u32 %v170, 4294901760
        %v344 = vsub.f32 %v170, %v343
        %v345 = vand.u32 %v344, 4294901760
        %v346 = vsub.f32 %v344, %v345
        %v347 = vand.u32 %v346, 4294901760
        %348 = vmatpush1.msra.mxu0 %v347
        %349 = vmatprep.subr.mxu0 0.0
        %v350 = vand.u32 %v169, 4294901760
        %v351 = vsub.f32 %v169, %v350
        %v352 = vand.u32 %v351, 4294901760
        %v353 = vsub.f32 %v351, %v352
        %v354 = vand.u32 %v353, 4294901760
        %355 = vmatpush1.msra.mxu0 %v354
        %356 = vmatprep.subr.mxu0 0.0
        %v357 = vand.u32 %v168, 4294901760
        %v358 = vsub.f32 %v168, %v357
        %v359 = vand.u32 %v358, 4294901760
        %v360 = vsub.f32 %v358, %v359
        %v361 = vand.u32 %v360, 4294901760
        %362 = vmatpush1.msra.mxu0 %v361
        %363 = vmatprep.subr.mxu0 0.0
        %v364 = vand.u32 %v167, 4294901760
        %v365 = vsub.f32 %v167, %v364
        %v366 = vand.u32 %v365, 4294901760
        %v367 = vsub.f32 %v365, %v366
        %v368 = vand.u32 %v367, 4294901760
        %369 = vmatpush1.msra.mxu0 %v368
        %370 = vmatprep.subr.mxu0 0.0
        %v371 = vand.u32 %v166, 4294901760
        %v372 = vsub.f32 %v166, %v371
        %v373 = vand.u32 %v372, 4294901760
        %v374 = vsub.f32 %v372, %v373
        %v375 = vand.u32 %v374, 4294901760
        %376 = vmatpush1.msra.mxu0 %v375
        %377 = vmatprep.subr.mxu0 0.0
        %v378 = vand.u32 %v165, 4294901760
        %v379 = vsub.f32 %v165, %v378
        %v380 = vand.u32 %v379, 4294901760
        %v381 = vsub.f32 %v379, %v380
        %v382 = vand.u32 %v381, 4294901760
        %383 = vmatpush1.msra.mxu0 %v382
        %384 = vmatprep.subr.mxu0 0.0
        %385 = vmatpush2.msra.mxu0 0.0
        %386 = vmatprep.subr.mxu0 0.0
        %387 = vmatpush2.msra.mxu0 0.0
        %388 = vmatprep.subr.mxu0 0.0
        %389 = vmatpush2.msra.mxu0 0.0
        %390 = vmatprep.subr.mxu0 0.0
        %391 = vmatpush2.msra.mxu0 0.0
        %392 = vmatprep.subr.mxu0 0.0
        %393 = vmatpush2.msra.mxu0 0.0
        %394 = vmatprep.subr.mxu0 0.0
        %395 = vmatpush2.msra.mxu0 0.0
        %396 = vmatprep.subr.mxu0 0.0
        %397 = vmatpush2.msra.mxu0 0.0
        %398 = vmatprep.subr.mxu0 0.0
        %399 = vmatpush2.msra.mxu0 0.0
        %400 = vmatprep.subr.mxu0 0.0
        %401 = vmatpush2.msra.mxu0 0.0
        %402 = vmatprep.subr.mxu0 0.0
        %403 = vmatpush2.msra.mxu0 0.0
        %404 = vmatprep.subr.mxu0 0.0
        %405 = vmatpush2.msra.mxu0 0.0
        %406 = vmatprep.subr.mxu0 0.0
        %407 = vmatpush2.msra.mxu0 0.0
        %408 = vmatprep.subr.mxu0 0.0
        %409 = vmatpush2.msra.mxu0 0.0
        %410 = vmatprep.subr.mxu0 0.0
        %411 = vmatpush2.msra.mxu0 0.0
        %412 = vmatprep.subr.mxu0 0.0
        %413 = vmatpush2.msra.mxu0 0.0
        %414 = vmatprep.subr.mxu0 0.0
        %415 = vmatpush2.msra.mxu0 0.0
        %416 = vmatprep.mubr.f32.mxu0 0.0
        %v417 = vand.u32 %v164, 4294901760
        %418 = vmatmul.mubr.f32.gmra.mxu0 %v417
        %v419 = vpop.f32.mrf.mxu0
        %v420 = vadd.f32 %v269, %v419
        %v421 = vpop.f32.mrf.mxu0
        %422 = vdwg.mxu0
        %423 = vmatprep.subr.mxu0 0.0
        %v424 = vand.u32 %v180, 4294901760
        %v425 = vsub.f32 %v180, %v424
        %426 = vmatpush1.msra.mxu0 %v425
        %427 = vmatprep.subr.mxu0 0.0
        %v428 = vand.u32 %v179, 4294901760
        %v429 = vsub.f32 %v179, %v428
        %430 = vmatpush1.msra.mxu0 %v429
        %431 = vmatprep.subr.mxu0 0.0
        %v432 = vand.u32 %v178, 4294901760
        %v433 = vsub.f32 %v178, %v432
        %434 = vmatpush1.msra.mxu0 %v433
        %435 = vmatprep.subr.mxu0 0.0
        %v436 = vand.u32 %v177, 4294901760
        %v437 = vsub.f32 %v177, %v436
        %438 = vmatpush1.msra.mxu0 %v437
        %439 = vmatprep.subr.mxu0 0.0
        %v440 = vand.u32 %v176, 4294901760
        %v441 = vsub.f32 %v176, %v440
        %442 = vmatpush1.msra.mxu0 %v441
        %443 = vmatprep.subr.mxu0 0.0
        %v444 = vand.u32 %v175, 4294901760
        %v445 = vsub.f32 %v175, %v444
        %446 = vmatpush1.msra.mxu0 %v445
        %447 = vmatprep.subr.mxu0 0.0
        %v448 = vand.u32 %v174, 4294901760
        %v449 = vsub.f32 %v174, %v448
        %450 = vmatpush1.msra.mxu0 %v449
        %451 = vmatprep.subr.mxu0 0.0
        %v452 = vand.u32 %v173, 4294901760
        %v453 = vsub.f32 %v173, %v452
        %454 = vmatpush1.msra.mxu0 %v453
        %455 = vmatprep.subr.mxu0 0.0
        %v456 = vand.u32 %v172, 4294901760
        %v457 = vsub.f32 %v172, %v456
        %458 = vmatpush1.msra.mxu0 %v457
        %459 = vmatprep.subr.mxu0 0.0
        %v460 = vand.u32 %v171, 4294901760
        %v461 = vsub.f32 %v171, %v460
        %462 = vmatpush1.msra.mxu0 %v461
        %463 = vmatprep.subr.mxu0 0.0
        %v464 = vand.u32 %v170, 4294901760
        %v465 = vsub.f32 %v170, %v464
        %466 = vmatpush1.msra.mxu0 %v465
        %467 = vmatprep.subr.mxu0 0.0
        %v468 = vand.u32 %v169, 4294901760
        %v469 = vsub.f32 %v169, %v468
        %470 = vmatpush1.msra.mxu0 %v469
        %471 = vmatprep.subr.mxu0 0.0
        %v472 = vand.u32 %v168, 4294901760
        %v473 = vsub.f32 %v168, %v472
        %474 = vmatpush1.msra.mxu0 %v473
        %475 = vmatprep.subr.mxu0 0.0
        %v476 = vand.u32 %v167, 4294901760
        %v477 = vsub.f32 %v167, %v476
        %478 = vmatpush1.msra.mxu0 %v477
        %479 = vmatprep.subr.mxu0 0.0
        %v480 = vand.u32 %v166, 4294901760
        %v481 = vsub.f32 %v166, %v480
        %482 = vmatpush1.msra.mxu0 %v481
        %483 = vmatprep.subr.mxu0 0.0
        %v484 = vand.u32 %v165, 4294901760
        %v485 = vsub.f32 %v165, %v484
        %486 = vmatpush1.msra.mxu0 %v485
        %487 = vmatprep.subr.mxu0 0.0
        %488 = vmatpush2.msra.mxu0 0.0
        %489 = vmatprep.subr.mxu0 0.0
        %490 = vmatpush2.msra.mxu0 0.0
        %491 = vmatprep.subr.mxu0 0.0
        %492 = vmatpush2.msra.mxu0 0.0
        %493 = vmatprep.subr.mxu0 0.0
        %494 = vmatpush2.msra.mxu0 0.0
        %495 = vmatprep.subr.mxu0 0.0
        %496 = vmatpush2.msra.mxu0 0.0
        %497 = vmatprep.subr.mxu0 0.0
        %498 = vmatpush2.msra.mxu0 0.0
        %499 = vmatprep.subr.mxu0 0.0
        %500 = vmatpush2.msra.mxu0 0.0
        %501 = vmatprep.subr.mxu0 0.0
        %502 = vmatpush2.msra.mxu0 0.0
        %503 = vmatprep.subr.mxu0 0.0
        %504 = vmatpush2.msra.mxu0 0.0
        %505 = vmatprep.subr.mxu0 0.0
        %506 = vmatpush2.msra.mxu0 0.0
        %507 = vmatprep.subr.mxu0 0.0
        %508 = vmatpush2.msra.mxu0 0.0
        %509 = vmatprep.subr.mxu0 0.0
        %510 = vmatpush2.msra.mxu0 0.0
        %511 = vmatprep.subr.mxu0 0.0
        %512 = vmatpush2.msra.mxu0 0.0
        %513 = vmatprep.subr.mxu0 0.0
        %514 = vmatpush2.msra.mxu0 0.0
        %515 = vmatprep.subr.mxu0 0.0
        %516 = vmatpush2.msra.mxu0 0.0
        %517 = vmatprep.subr.mxu0 0.0
        %518 = vmatpush2.msra.mxu0 0.0
        %519 = vmatprep.mubr.f32.mxu0 0.0
        %v520 = vand.u32 %v164, 4294901760
        %v521 = vsub.f32 %v164, %v520
        %522 = vmatmul.mubr.f32.gmra.mxu0 %v521
        %v523 = vpop.f32.mrf.mxu0
        %v524 = vadd.f32 %v420, %v523
        %v525 = vpop.f32.mrf.mxu0
        %526 = vdwg.mxu0
        %527 = vmatprep.subr.mxu0 0.0
        %v528 = vand.u32 %v180, 4294901760
        %529 = vmatpush1.msra.mxu0 %v528
        %530 = vmatprep.subr.mxu0 0.0
        %v531 = vand.u32 %v179, 4294901760
        %532 = vmatpush1.msra.mxu0 %v531
        %533 = vmatprep.subr.mxu0 0.0
        %v534 = vand.u32 %v178, 4294901760
        %535 = vmatpush1.msra.mxu0 %v534
        %536 = vmatprep.subr.mxu0 0.0
        %v537 = vand.u32 %v177, 4294901760
        %538 = vmatpush1.msra.mxu0 %v537
        %539 = vmatprep.subr.mxu0 0.0
        %v540 = vand.u32 %v176, 4294901760
        %541 = vmatpush1.msra.mxu0 %v540
        %542 = vmatprep.subr.mxu0 0.0
        %v543 = vand.u32 %v175, 4294901760
        %544 = vmatpush1.msra.mxu0 %v543
        %545 = vmatprep.subr.mxu0 0.0
        %v546 = vand.u32 %v174, 4294901760
        %547 = vmatpush1.msra.mxu0 %v546
        %548 = vmatprep.subr.mxu0 0.0
        %v549 = vand.u32 %v173, 4294901760
        %550 = vmatpush1.msra.mxu0 %v549
        %551 = vmatprep.subr.mxu0 0.0
        %v552 = vand.u32 %v172, 4294901760
        %553 = vmatpush1.msra.mxu0 %v552
        %554 = vmatprep.subr.mxu0 0.0
        %v555 = vand.u32 %v171, 4294901760
        %556 = vmatpush1.msra.mxu0 %v555
        %557 = vmatprep.subr.mxu0 0.0
        %v558 = vand.u32 %v170, 4294901760
        %559 = vmatpush1.msra.mxu0 %v558
        %560 = vmatprep.subr.mxu0 0.0
        %v561 = vand.u32 %v169, 4294901760
        %562 = vmatpush1.msra.mxu0 %v561
        %563 = vmatprep.subr.mxu0 0.0
        %v564 = vand.u32 %v168, 4294901760
        %565 = vmatpush1.msra.mxu0 %v564
        %566 = vmatprep.subr.mxu0 0.0
        %v567 = vand.u32 %v167, 4294901760
        %568 = vmatpush1.msra.mxu0 %v567
        %569 = vmatprep.subr.mxu0 0.0
        %v570 = vand.u32 %v166, 4294901760
        %571 = vmatpush1.msra.mxu0 %v570
        %572 = vmatprep.subr.mxu0 0.0
        %v573 = vand.u32 %v165, 4294901760
        %574 = vmatpush1.msra.mxu0 %v573
        %575 = vmatprep.subr.mxu0 0.0
        %576 = vmatpush2.msra.mxu0 0.0
        %577 = vmatprep.subr.mxu0 0.0
        %578 = vmatpush2.msra.mxu0 0.0
        %579 = vmatprep.subr.mxu0 0.0
        %580 = vmatpush2.msra.mxu0 0.0
        %581 = vmatprep.subr.mxu0 0.0
        %582 = vmatpush2.msra.mxu0 0.0
        %583 = vmatprep.subr.mxu0 0.0
        %584 = vmatpush2.msra.mxu0 0.0
        %585 = vmatprep.subr.mxu0 0.0
        %586 = vmatpush2.msra.mxu0 0.0
        %587 = vmatprep.subr.mxu0 0.0
        %588 = vmatpush2.msra.mxu0 0.0
        %589 = vmatprep.subr.mxu0 0.0
        %590 = vmatpush2.msra.mxu0 0.0
        %591 = vmatprep.subr.mxu0 0.0
        %592 = vmatpush2.msra.mxu0 0.0
        %593 = vmatprep.subr.mxu0 0.0
        %594 = vmatpush2.msra.mxu0 0.0
        %595 = vmatprep.subr.mxu0 0.0
        %596 = vmatpush2.msra.mxu0 0.0
        %597 = vmatprep.subr.mxu0 0.0
        %598 = vmatpush2.msra.mxu0 0.0
        %599 = vmatprep.subr.mxu0 0.0
        %600 = vmatpush2.msra.mxu0 0.0
        %601 = vmatprep.subr.mxu0 0.0
        %602 = vmatpush2.msra.mxu0 0.0
        %603 = vmatprep.subr.mxu0 0.0
        %604 = vmatpush2.msra.mxu0 0.0
        %605 = vmatprep.subr.mxu0 0.0
        %606 = vmatpush2.msra.mxu0 0.0
        %607 = vmatprep.mubr.f32.mxu0 0.0
        %v608 = vand.u32 %v164, 4294901760
        %v609 = vsub.f32 %v164, %v608
        %v610 = vand.u32 %v609, 4294901760
        %611 = vmatmul.mubr.f32.gmra.mxu0 %v610
        %v612 = vpop.f32.mrf.mxu0
        %v613 = vadd.f32 %v524, %v612
        %v614 = vpop.f32.mrf.mxu0
        %615 = vdwg.mxu0
        %616 = vmatprep.subr.mxu0 0.0
        %v617 = vand.u32 %v180, 4294901760
        %v618 = vsub.f32 %v180, %v617
        %v619 = vand.u32 %v618, 4294901760
        %620 = vmatpush1.msra.mxu0 %v619
        %621 = vmatprep.subr.mxu0 0.0
        %v622 = vand.u32 %v179, 4294901760
        %v623 = vsub.f32 %v179, %v622
        %v624 = vand.u32 %v623, 4294901760
        %625 = vmatpush1.msra.mxu0 %v624
        %626 = vmatprep.subr.mxu0 0.0
        %v627 = vand.u32 %v178, 4294901760
        %v628 = vsub.f32 %v178, %v627
        %v629 = vand.u32 %v628, 4294901760
        %630 = vmatpush1.msra.mxu0 %v629
        %631 = vmatprep.subr.mxu0 0.0
        %v632 = vand.u32 %v177, 4294901760
        %v633 = vsub.f32 %v177, %v632
        %v634 = vand.u32 %v633, 4294901760
        %635 = vmatpush1.msra.mxu0 %v634
        %636 = vmatprep.subr.mxu0 0.0
        %v637 = vand.u32 %v176, 4294901760
        %v638 = vsub.f32 %v176, %v637
        %v639 = vand.u32 %v638, 4294901760
        %640 = vmatpush1.msra.mxu0 %v639
        %641 = vmatprep.subr.mxu0 0.0
        %v642 = vand.u32 %v175, 4294901760
        %v643 = vsub.f32 %v175, %v642
        %v644 = vand.u32 %v643, 4294901760
        %645 = vmatpush1.msra.mxu0 %v644
        %646 = vmatprep.subr.mxu0 0.0
        %v647 = vand.u32 %v174, 4294901760
        %v648 = vsub.f32 %v174, %v647
        %v649 = vand.u32 %v648, 4294901760
        %650 = vmatpush1.msra.mxu0 %v649
        %651 = vmatprep.subr.mxu0 0.0
        %v652 = vand.u32 %v173, 4294901760
        %v653 = vsub.f32 %v173, %v652
        %v654 = vand.u32 %v653, 4294901760
        %655 = vmatpush1.msra.mxu0 %v654
        %656 = vmatprep.subr.mxu0 0.0
        %v657 = vand.u32 %v172, 4294901760
        %v658 = vsub.f32 %v172, %v657
        %v659 = vand.u32 %v658, 4294901760
        %660 = vmatpush1.msra.mxu0 %v659
        %661 = vmatprep.subr.mxu0 0.0
        %v662 = vand.u32 %v171, 4294901760
        %v663 = vsub.f32 %v171, %v662
        %v664 = vand.u32 %v663, 4294901760
        %665 = vmatpush1.msra.mxu0 %v664
        %666 = vmatprep.subr.mxu0 0.0
        %v667 = vand.u32 %v170, 4294901760
        %v668 = vsub.f32 %v170, %v667
        %v669 = vand.u32 %v668, 4294901760
        %670 = vmatpush1.msra.mxu0 %v669
        %671 = vmatprep.subr.mxu0 0.0
        %v672 = vand.u32 %v169, 4294901760
        %v673 = vsub.f32 %v169, %v672
        %v674 = vand.u32 %v673, 4294901760
        %675 = vmatpush1.msra.mxu0 %v674
        %676 = vmatprep.subr.mxu0 0.0
        %v677 = vand.u32 %v168, 4294901760
        %v678 = vsub.f32 %v168, %v677
        %v679 = vand.u32 %v678, 4294901760
        %680 = vmatpush1.msra.mxu0 %v679
        %681 = vmatprep.subr.mxu0 0.0
        %v682 = vand.u32 %v167, 4294901760
        %v683 = vsub.f32 %v167, %v682
        %v684 = vand.u32 %v683, 4294901760
        %685 = vmatpush1.msra.mxu0 %v684
        %686 = vmatprep.subr.mxu0 0.0
        %v687 = vand.u32 %v166, 4294901760
        %v688 = vsub.f32 %v166, %v687
        %v689 = vand.u32 %v688, 4294901760
        %690 = vmatpush1.msra.mxu0 %v689
        %691 = vmatprep.subr.mxu0 0.0
        %v692 = vand.u32 %v165, 4294901760
        %v693 = vsub.f32 %v165, %v692
        %v694 = vand.u32 %v693, 4294901760
        %695 = vmatpush1.msra.mxu0 %v694
        %696 = vmatprep.subr.mxu0 0.0
        %697 = vmatpush2.msra.mxu0 0.0
        %698 = vmatprep.subr.mxu0 0.0
        %699 = vmatpush2.msra.mxu0 0.0
        %700 = vmatprep.subr.mxu0 0.0
        %701 = vmatpush2.msra.mxu0 0.0
        %702 = vmatprep.subr.mxu0 0.0
        %703 = vmatpush2.msra.mxu0 0.0
        %704 = vmatprep.subr.mxu0 0.0
        %705 = vmatpush2.msra.mxu0 0.0
        %706 = vmatprep.subr.mxu0 0.0
        %707 = vmatpush2.msra.mxu0 0.0
        %708 = vmatprep.subr.mxu0 0.0
        %709 = vmatpush2.msra.mxu0 0.0
        %710 = vmatprep.subr.mxu0 0.0
        %711 = vmatpush2.msra.mxu0 0.0
        %712 = vmatprep.subr.mxu0 0.0
        %713 = vmatpush2.msra.mxu0 0.0
        %714 = vmatprep.subr.mxu0 0.0
        %715 = vmatpush2.msra.mxu0 0.0
        %716 = vmatprep.subr.mxu0 0.0
        %717 = vmatpush2.msra.mxu0 0.0
        %718 = vmatprep.subr.mxu0 0.0
        %719 = vmatpush2.msra.mxu0 0.0
        %720 = vmatprep.subr.mxu0 0.0
        %721 = vmatpush2.msra.mxu0 0.0
        %722 = vmatprep.subr.mxu0 0.0
        %723 = vmatpush2.msra.mxu0 0.0
        %724 = vmatprep.subr.mxu0 0.0
        %725 = vmatpush2.msra.mxu0 0.0
        %726 = vmatprep.subr.mxu0 0.0
        %727 = vmatpush2.msra.mxu0 0.0
        %728 = vmatprep.mubr.f32.mxu0 0.0
        %v729 = vand.u32 %v164, 4294901760
        %730 = vmatmul.mubr.f32.gmra.mxu0 %v729
        %v731 = vpop.f32.mrf.mxu0
        %v732 = vadd.f32 %v613, %v731
        %v733 = vpop.f32.mrf.mxu0
        %734 = vdwg.mxu0
        %735 = vmatprep.subr.mxu0 0.0
        %v736 = vand.u32 %v180, 4294901760
        %737 = vmatpush1.msra.mxu0 %v736
        %738 = vmatprep.subr.mxu0 0.0
        %v739 = vand.u32 %v179, 4294901760
        %740 = vmatpush1.msra.mxu0 %v739
        %741 = vmatprep.subr.mxu0 0.0
        %v742 = vand.u32 %v178, 4294901760
        %743 = vmatpush1.msra.mxu0 %v742
        %744 = vmatprep.subr.mxu0 0.0
        %v745 = vand.u32 %v177, 4294901760
        %746 = vmatpush1.msra.mxu0 %v745
        %747 = vmatprep.subr.mxu0 0.0
        %v748 = vand.u32 %v176, 4294901760
        %749 = vmatpush1.msra.mxu0 %v748
        %750 = vmatprep.subr.mxu0 0.0
        %v751 = vand.u32 %v175, 4294901760
        %752 = vmatpush1.msra.mxu0 %v751
        %753 = vmatprep.subr.mxu0 0.0
        %v754 = vand.u32 %v174, 4294901760
        %755 = vmatpush1.msra.mxu0 %v754
        %756 = vmatprep.subr.mxu0 0.0
        %v757 = vand.u32 %v173, 4294901760
        %758 = vmatpush1.msra.mxu0 %v757
        %759 = vmatprep.subr.mxu0 0.0
        %v760 = vand.u32 %v172, 4294901760
        %761 = vmatpush1.msra.mxu0 %v760
        %762 = vmatprep.subr.mxu0 0.0
        %v763 = vand.u32 %v171, 4294901760
        %764 = vmatpush1.msra.mxu0 %v763
        %765 = vmatprep.subr.mxu0 0.0
        %v766 = vand.u32 %v170, 4294901760
        %767 = vmatpush1.msra.mxu0 %v766
        %768 = vmatprep.subr.mxu0 0.0
        %v769 = vand.u32 %v169, 4294901760
        %770 = vmatpush1.msra.mxu0 %v769
        %771 = vmatprep.subr.mxu0 0.0
        %v772 = vand.u32 %v168, 4294901760
        %773 = vmatpush1.msra.mxu0 %v772
        %774 = vmatprep.subr.mxu0 0.0
        %v775 = vand.u32 %v167, 4294901760
        %776 = vmatpush1.msra.mxu0 %v775
        %777 = vmatprep.subr.mxu0 0.0
        %v778 = vand.u32 %v166, 4294901760
        %779 = vmatpush1.msra.mxu0 %v778
        %780 = vmatprep.subr.mxu0 0.0
        %v781 = vand.u32 %v165, 4294901760
        %782 = vmatpush1.msra.mxu0 %v781
        %783 = vmatprep.subr.mxu0 0.0
        %784 = vmatpush2.msra.mxu0 0.0
        %785 = vmatprep.subr.mxu0 0.0
        %786 = vmatpush2.msra.mxu0 0.0
        %787 = vmatprep.subr.mxu0 0.0
        %788 = vmatpush2.msra.mxu0 0.0
        %789 = vmatprep.subr.mxu0 0.0
        %790 = vmatpush2.msra.mxu0 0.0
        %791 = vmatprep.subr.mxu0 0.0
        %792 = vmatpush2.msra.mxu0 0.0
        %793 = vmatprep.subr.mxu0 0.0
        %794 = vmatpush2.msra.mxu0 0.0
        %795 = vmatprep.subr.mxu0 0.0
        %796 = vmatpush2.msra.mxu0 0.0
        %797 = vmatprep.subr.mxu0 0.0
        %798 = vmatpush2.msra.mxu0 0.0
        %799 = vmatprep.subr.mxu0 0.0
        %800 = vmatpush2.msra.mxu0 0.0
        %801 = vmatprep.subr.mxu0 0.0
        %802 = vmatpush2.msra.mxu0 0.0
        %803 = vmatprep.subr.mxu0 0.0
        %804 = vmatpush2.msra.mxu0 0.0
        %805 = vmatprep.subr.mxu0 0.0
        %806 = vmatpush2.msra.mxu0 0.0
        %807 = vmatprep.subr.mxu0 0.0
        %808 = vmatpush2.msra.mxu0 0.0
        %809 = vmatprep.subr.mxu0 0.0
        %810 = vmatpush2.msra.mxu0 0.0
        %811 = vmatprep.subr.mxu0 0.0
        %812 = vmatpush2.msra.mxu0 0.0
        %813 = vmatprep.subr.mxu0 0.0
        %814 = vmatpush2.msra.mxu0 0.0
        %815 = vmatprep.mubr.f32.mxu0 0.0
        %v816 = vand.u32 %v164, 4294901760
        %817 = vmatmul.mubr.f32.gmra.mxu0 %v816
        %v818 = vpop.f32.mrf.mxu0
        %v819 = vadd.f32 %v732, %v818
        %v820 = vpop.f32.mrf.mxu0
        %821 = vdwg.mxu0
        %v822 = vmul.f32 %v819, 0.5
        %vm823 = vcmask 523264
        %824 = vst.msk [vmem:[%s156] sm:$0xff] %vm823, %v822
        %s825 = sand.u32 %s87, 1
        %s826 = scalar_lea.sflag [#allocation3], %s825
        %s827 = sand.u32 %s87, 1
        %s828 = smul.addr %s827, 8
        %s829 = scalar_lea.vmem [#allocation2], %s828
        // Predicated region
        $region29: #{tpu_custom_call.1} parent=27 // pred_check
          %p830 = pneg %p97
        $region30: #{tpu_custom_call.1} parent=27 // pred_check_branch
          %832 = sbr.rel (%p830) target = $region32
        $region31: #{tpu_custom_call.1} parent=27 // pred_region
          %s834 = ssub.s32 128, 128
          %835 = vsyncadd %s826, %s834
          %s836 = sadd.s32 %s21, %s20
          %s837 = smul.addr %s836, 128
          %s838 = scalar_lea.hbm %s2, %s837
          %s840 = sshll.u32 %s829, 4
          %s841 = int_to_ptr.vmem [resolvable:$true] %s840
          %843 = dma.vmem_to_hbm [thread:$0]  %s841, 128, %s838, %s826
        $region32: #{tpu_custom_call.1} parent=27 // pred_fallthru
          _
      $region28: #{tpu_custom_call.1} parent=5 // pred_fallthru
        _
      %p844 = scmp.le.s32.totalorder 2, %s11
      // Predicated region
      $region33: #{tpu_custom_call.1} parent=5 // pred_check
        %p845 = pneg %p844
      $region34: #{tpu_custom_call.1} parent=5 // pred_check_branch
        %847 = sbr.rel (%p845) target = $region36
      $region35: #{tpu_custom_call.1} parent=5 // pred_region
        %s848 = ssub.s32 %s11, 2
        // Predicated region
        $region37: #{tpu_custom_call.1} parent=35 // pred_check
          %p849 = pneg %p103
        $region38: #{tpu_custom_call.1} parent=35 // pred_check_branch
          %851 = sbr.rel (%p849) target = $region40
        $region39: #{tpu_custom_call.1} parent=35 // pred_region
          %s852 = sand.u32 %s88, 1
          %s853 = scalar_lea.sflag [#allocation3], %s852
          %s854 = sand.u32 %s88, 1
          %s855 = smul.addr %s854, 8
          %s856 = scalar_lea.vmem [#allocation2], %s855
          %857 = dma.done %s853, 128
        $region40: #{tpu_custom_call.1} parent=35 // pred_fallthru
          _
      $region36: #{tpu_custom_call.1} parent=5 // pred_fallthru
        _
    $region6: #{tpu_custom_call.1} parent=1 // loop_footer
      %s15 = sadd.s32 1, %s11
    $region7: #{tpu_custom_call.1} parent=1 // loop_footer_branch
      %10 = sbr.rel target = $region3
    $region8: #{tpu_custom_call.1} parent=1 // loop_exit
      _
    %858 = vsyncpa [#allocation3], 1
    %s859 = scalar_lea.sflag [#allocation3], 1
    %860 = vsyncpa %s859, 1

</llo_original>
